<compile_context>
chip_gen: v5e
topology: v5e:2x2
jax: 0.10.0
libtpu: 0.0.40
codegen_flags: <defaults>
</compile_context>

<pallas_src>
import functools

import jax
import jax.numpy as jnp
from jax import lax
from jax.experimental import pallas as pl
from jax.experimental.pallas import tpu as pltpu


def _style_loss_kernel(x_ref, m_ref, tg_ref, g_ref, loss_ref, acc_ref, *, scale):
    """Accumulate G = (x*mask) @ (x*mask).T over column tiles; finalize MSE loss."""
    k = pl.program_id(0)

    @pl.when(k == 0)
    def _init():
        acc_ref[...] = jnp.zeros_like(acc_ref)

    x = x_ref[...].astype(jnp.float32)           # (rows, tk)
    m = m_ref[...].astype(jnp.float32)           # (1, tk) -> broadcasts over rows
    f = x * m                                    # masked features tile
    # f @ f.T on the MXU: contract both operands along the column (lane) axis.
    acc_ref[...] += lax.dot_general(
        f, f,
        dimension_numbers=(((1,), (1,)), ((), ())),
        preferred_element_type=jnp.float32,
    )

    @pl.when(k == pl.num_programs(0) - 1)
    def _finalize():
        g = acc_ref[...]
        g_ref[...] = g.astype(g_ref.dtype)
        d = g - tg_ref[...].astype(jnp.float32)
        # mean over rows*rows elements * weight, folded into `scale`.
        loss_ref[...] = jnp.sum(d * d, keepdims=True) * scale


def style_loss_forward(x, mask, target_gram, weight, *, max_block_bytes=2 * 1024 * 1024):
    """Returns (input, G, loss) matching StyleLoss.forward (input is returned unchanged)."""
    N, C, H, W = x.shape
    rows, cols = N * C, H * W

    x2 = x.reshape(rows, cols)
    m2 = jnp.broadcast_to(mask, (1, 1, H, W)).reshape(1, cols).astype(x.dtype)

    # Column tile: big enough to amortize per-step pipeline overhead (~2 MiB of
    # f32 per feature block), multiple of 128 lanes, capped at the padded width.
    bytes_per_col = max(rows, 1) * 4
    tk = max(128, (max_block_bytes // bytes_per_col) // 128 * 128)
    tk = min(tk, pl.cdiv(cols, 128) * 128)

    # Zero-pad columns to a multiple of tk (zero feature columns contribute
    # nothing to the Gram matrix regardless of the mask padding).
    cols_p = pl.cdiv(cols, tk) * tk
    if cols_p != cols:
        pad = cols_p - cols
        x2 = jnp.pad(x2, ((0, 0), (0, pad)))
        m2 = jnp.pad(m2, ((0, 0), (0, pad)))

    # loss = mean((G - target_gram)^2) * weight ; mean is over rows*rows elems.
    scale = float(weight) / float(rows * rows)

    grid = (cols_p // tk,)
    g, loss = pl.pallas_call(
        functools.partial(_style_loss_kernel, scale=scale),
        out_shape=(
            jax.ShapeDtypeStruct((rows, rows), jnp.float32),
            jax.ShapeDtypeStruct((1, 1), jnp.float32),
        ),
        grid_spec=pltpu.PrefetchScalarGridSpec(
            num_scalar_prefetch=0,
            grid=grid,
            in_specs=[
                pl.BlockSpec((rows, tk), lambda k: (0, k)),    # feature column tile
                pl.BlockSpec((1, tk), lambda k: (0, k)),       # mask column tile (broadcast over rows)
                pl.BlockSpec((rows, rows), lambda k: (0, 0)),  # target gram (resident, read in epilogue)
            ],
            out_specs=[
                pl.BlockSpec((rows, rows), lambda k: (0, 0)),  # Gram matrix (written in epilogue)
                pl.BlockSpec((1, 1), lambda k: (0, 0)),        # scalar loss (written in epilogue)
            ],
            scratch_shapes=[pltpu.VMEM((rows, rows), jnp.float32)],
        ),
        compiler_params=pltpu.CompilerParams(
            dimension_semantics=("arbitrary",),  # reduction (K) axis
        ),
    )(x2, m2, target_gram.astype(jnp.float32))

    # forward() returns the input unchanged; G and loss are stored side values.
    return x, g, loss[0, 0]


if __name__ == "__main__":
    key = jax.random.PRNGKey(0)
    k_x, k_t, k_m = jax.random.split(key, 3)

    N, C, H, W = 2, 4, 16, 16
    rows = N * C
    x = jax.random.normal(k_x, (N, C, H, W), dtype=jnp.float32)
    # mask is (1, 1, H, W) and broadcasts over batch/channels, like the module.
    mask = (jax.random.uniform(k_m, (1, 1, H, W), dtype=jnp.float32) > 0.5).astype(jnp.float32)
    # target_gram built from a reference feature map, like the module would store.
    x_t = jax.random.normal(k_t, (N, C, H, W), dtype=jnp.float32)
    feats_t = (x_t * mask).reshape(rows, H * W)
    target_gram = feats_t @ feats_t.T
    weight = 5.0

    out, G, loss = style_loss_forward(x, mask, target_gram, weight)
    out = jax.block_until_ready(out)
    G = jax.block_until_ready(G)
    loss = jax.block_until_ready(loss)

    # Reference check in plain JAX (same semantics as gram_matrix + F.mse_loss * weight).
    feats = (x * mask).reshape(rows, H * W)
    G_ref = feats @ feats.T
    loss_ref = jnp.mean((G_ref - target_gram) ** 2) * weight

    assert out.shape == x.shape and jnp.allclose(out, x)
    assert jnp.allclose(G, G_ref, rtol=1e-4, atol=1e-3), (G, G_ref)
    assert jnp.allclose(loss, loss_ref, rtol=1e-4, atol=1e-3), (loss, loss_ref)

    print("KERNEL_OK")
</pallas_src>

<mosaic_0001>
module attributes {stable_mosaic.version = 11 : i64} {
  func.func @_style_loss_kernel(%arg0: i32, %arg1: memref<8x256xf32, #tpu.memory_space<vmem>>, %arg2: memref<1x256xf32, #tpu.memory_space<vmem>>, %arg3: memref<8x8xf32, #tpu.memory_space<vmem>>, %arg4: memref<8x8xf32, #tpu.memory_space<vmem>>, %arg5: memref<1x1xf32, #tpu.memory_space<vmem>>, %arg6: memref<8x8xf32, #tpu.memory_space<vmem>>) attributes {dimension_semantics = [#tpu.dimension_semantics<arbitrary>], iteration_bounds = array<i64: 1>, scalar_prefetch = 0 : i64, scratch_operands = 1 : i64, tpu.core_type = #tpu.core_type<tc>, window_params = [{transform_indices = @transform_0, window_bounds = array<i64: 8, 256>}, {transform_indices = @transform_1, window_bounds = array<i64: 1, 256>}, {pipeline_mode = #tpu.pipeline_mode<synchronous>, transform_indices = @transform_2, window_bounds = array<i64: 8, 8>}, {pipeline_mode = #tpu.pipeline_mode<synchronous>, transform_indices = @transform_3, window_bounds = array<i64: 8, 8>}, {pipeline_mode = #tpu.pipeline_mode<synchronous>, transform_indices = @transform_4, window_bounds = array<i64: 1, 1>}]} {
    %c0_i32 = arith.constant 0 : i32
    %0 = arith.cmpi eq, %arg0, %c0_i32 : i32
    %1 = arith.extui %0 : i1 to i32
    %c0_i32_0 = arith.constant 0 : i32
    %2 = arith.cmpi ne, %1, %c0_i32_0 : i32
    scf.if %2 {
      %cst_10 = arith.constant 0.000000e+00 : f32
      %14 = vector.broadcast %cst_10 : f32 to vector<8x8xf32>
      %c0_11 = arith.constant 0 : index
      %c0_12 = arith.constant 0 : index
      %15 = vector.load %arg6[%c0_11, %c0_12] : memref<8x8xf32, #tpu.memory_space<vmem>>, vector<8x8xf32>
      tpu.vector_store %arg6[%c0_11, %c0_12], %14 {strides = array<i32>} : memref<8x8xf32, #tpu.memory_space<vmem>>, vector<8x8xf32>,
    } else {
    }
    %c0 = arith.constant 0 : index
    %c0_1 = arith.constant 0 : index
    %3 = vector.load %arg1[%c0, %c0_1] : memref<8x256xf32, #tpu.memory_space<vmem>>, vector<8x256xf32>
    %c0_2 = arith.constant 0 : index
    %c0_3 = arith.constant 0 : index
    %4 = vector.load %arg2[%c0_2, %c0_3] : memref<1x256xf32, #tpu.memory_space<vmem>>, vector<1x256xf32>
    %5 = vector.broadcast %4 : vector<1x256xf32> to vector<8x256xf32>
    %6 = arith.mulf %3, %5 : vector<8x256xf32>
    %c0_4 = arith.constant 0 : index
    %c0_5 = arith.constant 0 : index
    %7 = vector.load %arg6[%c0_4, %c0_5] : memref<8x8xf32, #tpu.memory_space<vmem>>, vector<8x8xf32>
    %cst = arith.constant dense<0.000000e+00> : vector<8x8xf32>
    %8 = tpu.matmul %6, %6, %cst {dimension_numbers = #tpu.dot_dimension_numbers<[1], [1], [0], [0], [0, 0, 1, 0], [], []>} : vector<8x256xf32>, vector<8x256xf32>, vector<8x8xf32> -> vector<8x8xf32>
    %9 = arith.addf %7, %8 : vector<8x8xf32>
    %c0_6 = arith.constant 0 : index
    %c0_7 = arith.constant 0 : index
    %10 = vector.load %arg6[%c0_6, %c0_7] : memref<8x8xf32, #tpu.memory_space<vmem>>, vector<8x8xf32>
    tpu.vector_store %arg6[%c0_6, %c0_7], %9 {strides = array<i32>} : memref<8x8xf32, #tpu.memory_space<vmem>>, vector<8x8xf32>,
    %c0_i32_8 = arith.constant 0 : i32
    %11 = arith.cmpi eq, %arg0, %c0_i32_8 : i32
    %12 = arith.extui %11 : i1 to i32
    %c0_i32_9 = arith.constant 0 : i32
    %13 = arith.cmpi ne, %12, %c0_i32_9 : i32
    scf.if %13 {
      %c0_10 = arith.constant 0 : index
      %c0_11 = arith.constant 0 : index
      %14 = vector.load %arg6[%c0_10, %c0_11] : memref<8x8xf32, #tpu.memory_space<vmem>>, vector<8x8xf32>
      %c0_12 = arith.constant 0 : index
      %c0_13 = arith.constant 0 : index
      %15 = vector.load %arg4[%c0_12, %c0_13] : memref<8x8xf32, #tpu.memory_space<vmem>>, vector<8x8xf32>
      tpu.vector_store %arg4[%c0_12, %c0_13], %14 {strides = array<i32>} : memref<8x8xf32, #tpu.memory_space<vmem>>, vector<8x8xf32>,
      %c0_14 = arith.constant 0 : index
      %c0_15 = arith.constant 0 : index
      %16 = vector.load %arg3[%c0_14, %c0_15] : memref<8x8xf32, #tpu.memory_space<vmem>>, vector<8x8xf32>
      %17 = arith.subf %14, %16 : vector<8x8xf32>
      %18 = arith.mulf %17, %17 : vector<8x8xf32>
      %19 = vector.shape_cast %18 : vector<8x8xf32> to vector<1x8x8xf32>
      %cst_16 = arith.constant dense<0.000000e+00> : vector<1xf32>
      %20 = vector.multi_reduction <add>, %19, %cst_16 [1, 2] : vector<1x8x8xf32> to vector<1xf32>
      %21 = vector.shape_cast %20 : vector<1xf32> to vector<1x1x1xf32>
      %22 = vector.extract %21[0, 0, 0] : f32 from vector<1x1x1xf32>
      %23 = vector.broadcast %22 : f32 to vector<1x1xf32>
      %cst_17 = arith.constant 7.812500e-02 : f32
      %24 = vector.broadcast %cst_17 : f32 to vector<1x1xf32>
      %25 = arith.mulf %23, %24 : vector<1x1xf32>
      %c0_18 = arith.constant 0 : index
      %c0_19 = arith.constant 0 : index
      %26 = vector.load %arg5[%c0_18, %c0_19] : memref<1x1xf32, #tpu.memory_space<vmem>>, vector<1x1xf32>
      tpu.vector_store %arg5[%c0_18, %c0_19], %25 {strides = array<i32>} : memref<1x1xf32, #tpu.memory_space<vmem>>, vector<1x1xf32>,
    } else {
    }
    return
  }
  func.func @transform_0(%arg0: i32) -> (i32, i32) {
    %c0_i32 = arith.constant 0 : i32
    %c0_i32_0 = arith.constant 0 : i32
    return %c0_i32, %arg0 : i32, i32
  }
  func.func @transform_1(%arg0: i32) -> (i32, i32) {
    %c0_i32 = arith.constant 0 : i32
    %c0_i32_0 = arith.constant 0 : i32
    return %c0_i32, %arg0 : i32, i32
  }
  func.func @transform_2(%arg0: i32) -> (i32, i32) {
    %c0_i32 = arith.constant 0 : i32
    %c0_i32_0 = arith.constant 0 : i32
    %c0_i32_1 = arith.constant 0 : i32
    return %c0_i32, %c0_i32_0 : i32, i32
  }
  func.func @transform_3(%arg0: i32) -> (i32, i32) {
    %c0_i32 = arith.constant 0 : i32
    %c0_i32_0 = arith.constant 0 : i32
    %c0_i32_1 = arith.constant 0 : i32
    return %c0_i32, %c0_i32_0 : i32, i32
  }
  func.func @transform_4(%arg0: i32) -> (i32, i32) {
    %c0_i32 = arith.constant 0 : i32
    %c0_i32_0 = arith.constant 0 : i32
    %c0_i32_1 = arith.constant 0 : i32
    return %c0_i32, %c0_i32_0 : i32, i32
  }
}

</mosaic_0001>

<llo_original>
// kernel: tpu_custom_call.1
$region0: #{tpu_custom_call.1}
  #allocation0 [shape = 'u32[]', space=smem, size = 0x4, offset = 0x4, fixed_abs, tag = 'smem constant byte address 0x4 - core index']
  #allocation1 [shape = 'u32[72,128]{1,0:T(1,128)}', space=vmem, size = 0x9000, scoped, tag = 'internal scratch']
  #allocation2 [shape = 'f32[8,8]{1,0:T(8,128)}', space=vmem, size = 0x1000, scoped, tag = 'scratch operand']
  %s0 = inlined_call_operand.hbm [shape: f32[8,256], index: 0, kind: input, shape index: {}]
  %s1 = inlined_call_operand.hbm [shape: f32[1,256], index: 1, kind: input, shape index: {}]
  %s2 = inlined_call_operand.hbm [shape: f32[8,8], index: 2, kind: input, shape index: {}]
  %s3 = inlined_call_operand.hbm [shape: f32[8,8], index: 3, kind: output, shape index: {0}]
  %s4 = inlined_call_operand.hbm [shape: f32[1,1], index: 4, kind: output, shape index: {1}]
  %5 = xla_tuple %s3, %s4
  %s6 = sld [smem:[#allocation0]]
  $region50: #{tpu_custom_call.1} parent=0
    _
  %s8 = ssub.s32 1, %s6
  %s9 = scalar_select 0, %s8, %s6
  $region1: #{tpu_custom_call.1} parent=0
    #allocation3 [shape = 'u8[8192]{0}', space=vmem, size = 0x2000, scoped, tag = 'input window, operand 0, single buffered']
    #allocation4 [shape = 's32[1]{0}', space=sflag, size = 0x4, scoped, tag = 'scoped memory for tpu_custom_call.1']
    #allocation5 [shape = 's32[1]{0}', space=sflag, size = 0x4, scoped, tag = 'scoped memory for tpu_custom_call.1']
    #allocation6 [shape = 'u8[1024]{0}', space=vmem, size = 0x400, scoped, tag = 'input window, operand 1, single buffered']
    #allocation7 [shape = 's32[1]{0}', space=sflag, size = 0x4, scoped, tag = 'scoped memory for tpu_custom_call.1']
    #allocation8 [shape = 'u8[4096]{0}', space=vmem, size = 0x1000, scoped, tag = 'input window, operand 2, single buffered']
    #allocation9 [shape = 'u8[4096]{0}', space=vmem, size = 0x1000, scoped, tag = 'output window, operand 0, single buffered']
    #allocation10 [shape = 'u8[512]{0}', space=vmem, size = 0x400, scoped, tag = 'output window, operand 1, single buffered']
    #allocation11 [shape = 's32[1]{0}', space=sflag, size = 0x4, scoped, tag = 'scoped memory for tpu_custom_call.1']
    %10 = vsyncpa [#allocation4], 0
    %11 = vsyncpa [#allocation7], 0
    %12 = vsyncpa [#allocation5], 0
    %13 = vsyncpa [#allocation11], 0
    // Predicated region
    $region2: #{tpu_custom_call.1} parent=1 // pred_check
      _
    $region3: #{tpu_custom_call.1} parent=1 // pred_check_branch
      %15 = sbr.rel (0) target = $region5
    $region4: #{tpu_custom_call.1} parent=1 // pred_region
      %17 = vsyncadd [#allocation4], 0
      %s19 = sshll.u32 %s0, 4
      %s20 = int_to_ptr.hbm [resolvable:$true] %s19
      %s21 = sshll.u32 [#allocation3], 4
      %s22 = int_to_ptr.vmem [resolvable:$true] %s21
      %24 = dma.hbm_to_vmem [thread:$0]  %s20, 256, %s22, [#allocation4]
    $region5: #{tpu_custom_call.1} parent=1 // pred_fallthru
      _
    // Predicated region
    $region6: #{tpu_custom_call.1} parent=1 // pred_check
      _
    $region7: #{tpu_custom_call.1} parent=1 // pred_check_branch
      %26 = sbr.rel (0) target = $region9
    $region8: #{tpu_custom_call.1} parent=1 // pred_region
      %28 = vsyncadd [#allocation7], 0
      %s30 = sshll.u32 %s1, 4
      %s31 = int_to_ptr.hbm [resolvable:$true] %s30
      %s32 = sshll.u32 [#allocation6], 4
      %s33 = int_to_ptr.vmem [resolvable:$true] %s32
      %35 = dma.hbm_to_vmem [thread:$0]  %s31, 32, %s33, [#allocation7]
    $region9: #{tpu_custom_call.1} parent=1 // pred_fallthru
      _
    // Predicated region
    $region10: #{tpu_custom_call.1} parent=1 // pred_check
      _
    $region11: #{tpu_custom_call.1} parent=1 // pred_check_branch
      %37 = sbr.rel (0) target = $region13
    $region12: #{tpu_custom_call.1} parent=1 // pred_region
      %39 = vsyncadd [#allocation7], 0
      %s41 = sshll.u32 %s2, 4
      %s42 = int_to_ptr.hbm [resolvable:$true] %s41
      %s43 = sshll.u32 [#allocation8], 4
      %s44 = int_to_ptr.vmem [resolvable:$true] %s43
      %46 = dma.hbm_to_vmem [thread:$0]  %s42, 128, %s44, [#allocation7]
    $region13: #{tpu_custom_call.1} parent=1 // pred_fallthru
      _
    // Predicated region
    $region14: #{tpu_custom_call.1} parent=1 // pred_check
      _
    $region15: #{tpu_custom_call.1} parent=1 // pred_check_branch
      %48 = sbr.rel (0) target = $region17
    $region16: #{tpu_custom_call.1} parent=1 // pred_region
      %50 = dma.done [#allocation4], 256
    $region17: #{tpu_custom_call.1} parent=1 // pred_fallthru
      _
    // Predicated region
    $region18: #{tpu_custom_call.1} parent=1 // pred_check
      _
    $region19: #{tpu_custom_call.1} parent=1 // pred_check_branch
      %52 = sbr.rel (0) target = $region21
    $region20: #{tpu_custom_call.1} parent=1 // pred_region
      %54 = dma.done [#allocation7], 32
    $region21: #{tpu_custom_call.1} parent=1 // pred_fallthru
      _
    // Predicated region
    $region22: #{tpu_custom_call.1} parent=1 // pred_check
      _
    $region23: #{tpu_custom_call.1} parent=1 // pred_check_branch
      %56 = sbr.rel (0) target = $region25
    $region24: #{tpu_custom_call.1} parent=1 // pred_region
      %58 = dma.done [#allocation7], 128
    $region25: #{tpu_custom_call.1} parent=1 // pred_fallthru
      _
    %p59 = scmp.eq.s32.totalorder 0, 0
    // Predicated region
    $region26: #{tpu_custom_call.1} parent=1 // pred_check
      %p60 = pneg %p59
    $region27: #{tpu_custom_call.1} parent=1 // pred_check_branch
      %62 = sbr.rel (%p60) target = $region29
    $region28: #{tpu_custom_call.1} parent=1 // pred_region
      %vm63 = vcmask 64512
      %64 = vst.msk [vmem:[#allocation2] sm:$0xff] %vm63, 0.0
    $region29: #{tpu_custom_call.1} parent=1 // pred_fallthru
      _
    %v65 = vld [vmem:[#allocation3] sm:$0xff]
    %v66 = vld [vmem:[#allocation3 + $0x8] sm:$0xff]
    %v67 = vld [vmem:[#allocation6] sm:$0x3]
    %v69 = vperm.slane %v67, 0
    %v70 = vperm.slane %v67, 1
    %v73 = vmul.f32 %v65, %v69
    %v74 = vmul.f32 %v66, %v70
    %v75 = vld [vmem:[#allocation2] sm:$0xff]
    %76 = vmatpush.xpose.msra.mxu0 0.0
    %77 = vmatpush.xpose.msra.mxu0 0.0
    %78 = vmatpush.xpose.msra.mxu0 0.0
    %79 = vmatpush.xpose.msra.mxu0 0.0
    %80 = vmatpush.xpose.msra.mxu0 0.0
    %81 = vmatpush.xpose.msra.mxu0 0.0
    %82 = vmatpush.xpose.msra.mxu0 0.0
    %83 = vmatpush.xpose.msra.mxu0 0.0
    %84 = vmatpush.xpose.msra.mxu0 0.0
    %85 = vmatpush.xpose.msra.mxu0 0.0
    %86 = vmatpush.xpose.msra.mxu0 0.0
    %87 = vmatpush.xpose.msra.mxu0 0.0
    %88 = vmatpush.xpose.msra.mxu0 0.0
    %89 = vmatpush.xpose.msra.mxu0 0.0
    %90 = vmatpush.xpose.msra.mxu0 0.0
    %91 = vmatpush.xpose.msra.mxu0 %v73
    %92 = vmatmul.f32.gmra.mxu0 %v73
    %v93 = vpop.f32.mrf.mxu0
    %v94 = vadd.f32 0.0, %v93
    %95 = vdwg.mxu0
    %96 = vmatpush.xpose.msra.mxu0 0.0
    %97 = vmatpush.xpose.msra.mxu0 0.0
    %98 = vmatpush.xpose.msra.mxu0 0.0
    %99 = vmatpush.xpose.msra.mxu0 0.0
    %100 = vmatpush.xpose.msra.mxu0 0.0
    %101 = vmatpush.xpose.msra.mxu0 0.0
    %102 = vmatpush.xpose.msra.mxu0 0.0
    %103 = vmatpush.xpose.msra.mxu0 0.0
    %104 = vmatpush.xpose.msra.mxu0 0.0
    %105 = vmatpush.xpose.msra.mxu0 0.0
    %106 = vmatpush.xpose.msra.mxu0 0.0
    %107 = vmatpush.xpose.msra.mxu0 0.0
    %108 = vmatpush.xpose.msra.mxu0 0.0
    %109 = vmatpush.xpose.msra.mxu0 0.0
    %110 = vmatpush.xpose.msra.mxu0 0.0
    %111 = vmatpush.xpose.msra.mxu0 %v74
    %112 = vmatmul.f32.gmra.mxu0 %v74
    %v113 = vpop.f32.mrf.mxu0
    %v114 = vadd.f32 %v94, %v113
    %115 = vdwg.mxu0
    %v116 = vadd.f32 %v75, %v114
    %vm117 = vcmask 64512
    %118 = vst.msk [vmem:[#allocation2] sm:$0xff] %vm117, %v116
    // Predicated region
    $region30: #{tpu_custom_call.1} parent=1 // pred_check
      %p119 = pneg %p59
    $region31: #{tpu_custom_call.1} parent=1 // pred_check_branch
      %121 = sbr.rel (%p119) target = $region33
    $region32: #{tpu_custom_call.1} parent=1 // pred_region
      %v122 = vld [vmem:[#allocation2] sm:$0xff]
      %123 = vst.msk [vmem:[#allocation9] sm:$0xff] %vm117, %v122
      %v124 = vld [vmem:[#allocation8] sm:$0xff]
      %v125 = vsub.f32 %v122, %v124
      %v126 = vmul.f32 %v125, %v125
      %v127 = vsel %vm117, %v126, 0.0
      %128 = vadd.xlane.f32.xlu0 %v127
      %v129 = vpop.xlane.xlu0 %128
      %v130 = vrot.slane %v129, 4
      %v131 = vadd.f32 %v129, %v130
      %v132 = vrot.slane %v131, 2
      %v133 = vadd.f32 %v131, %v132
      %v134 = vrot.slane %v133, 1
      %v135 = vadd.f32 %v133, %v134
      %s136 = vtos %v135
      %v137 = vstv %s136
      %v138 = vmul.f32 %v137, 0.078125
      %vm139 = vcmask 0
      %140 = vst.msk [vmem:[#allocation10] sm:$0x1] %vm139, %v138
    $region33: #{tpu_custom_call.1} parent=1 // pred_fallthru
      _
    // Predicated region
    $region34: #{tpu_custom_call.1} parent=1 // pred_check
      _
    $region35: #{tpu_custom_call.1} parent=1 // pred_check_branch
      %142 = sbr.rel (0) target = $region37
    $region36: #{tpu_custom_call.1} parent=1 // pred_region
      %144 = vsyncadd [#allocation5], 0
      %s146 = sshll.u32 [#allocation9], 4
      %s147 = int_to_ptr.vmem [resolvable:$true] %s146
      %s148 = sshll.u32 %s3, 4
      %s149 = int_to_ptr.hbm [resolvable:$true] %s148
      %151 = dma.vmem_to_hbm [thread:$0]  %s147, 128, %s149, [#allocation5]
    $region37: #{tpu_custom_call.1} parent=1 // pred_fallthru
      _
    // Predicated region
    $region38: #{tpu_custom_call.1} parent=1 // pred_check
      _
    $region39: #{tpu_custom_call.1} parent=1 // pred_check_branch
      %153 = sbr.rel (0) target = $region41
    $region40: #{tpu_custom_call.1} parent=1 // pred_region
      %155 = vsyncadd [#allocation11], 0
      %s157 = sshll.u32 [#allocation10], 4
      %s158 = int_to_ptr.vmem [resolvable:$true] %s157
      %s159 = sshll.u32 %s4, 4
      %s160 = int_to_ptr.hbm [resolvable:$true] %s159
      %162 = dma.vmem_to_hbm [thread:$0]  %s158, 16, %s160, [#allocation11]
    $region41: #{tpu_custom_call.1} parent=1 // pred_fallthru
      _
    // Predicated region
    $region42: #{tpu_custom_call.1} parent=1 // pred_check
      _
    $region43: #{tpu_custom_call.1} parent=1 // pred_check_branch
      %164 = sbr.rel (0) target = $region45
    $region44: #{tpu_custom_call.1} parent=1 // pred_region
      %166 = dma.done [#allocation5], 128
    $region45: #{tpu_custom_call.1} parent=1 // pred_fallthru
      _
    // Predicated region
    $region46: #{tpu_custom_call.1} parent=1 // pred_check
      _
    $region47: #{tpu_custom_call.1} parent=1 // pred_check_branch
      %168 = sbr.rel (0) target = $region49
    $region48: #{tpu_custom_call.1} parent=1 // pred_region
      %170 = dma.done [#allocation11], 16
    $region49: #{tpu_custom_call.1} parent=1 // pred_fallthru
      _
    %171 = vsyncpa [#allocation4], 1
    %172 = vsyncpa [#allocation7], 1
    %173 = vsyncpa [#allocation5], 1
    %174 = vsyncpa [#allocation11], 1

</llo_original>
